<compile_context>
chip_gen: v5e
topology: v5e:2x2
jax: 0.10.0
libtpu: 0.0.40
codegen_flags: <defaults>
</compile_context>

<pallas_src>
import functools

import jax
import jax.numpy as jnp
from jax.experimental import pallas as pl
from jax.experimental.pallas import tpu as pltpu


def _round_up(x: int, m: int) -> int:
    return (x + m - 1) // m * m


@functools.lru_cache(maxsize=1)
def _vmem_budget_bytes() -> int:
    """VMEM request: physical capacity minus headroom, capped for big-VMEM chips."""
    cap = 128 * 1024 * 1024
    try:
        info = pltpu.get_tpu_info()
        cap = int(getattr(info, "vmem_capacity_bytes", cap))
    except Exception:
        pass
    # Never ask for all of physical VMEM (v7x only has 64 MiB per TensorCore,
    # and the compiler needs internal scratch/semaphore space).
    return max(32 * 1024 * 1024, min(cap - 16 * 1024 * 1024, 112 * 1024 * 1024))


def _half_128(t: int) -> int:
    return max(128, 128 * ((t // 128) // 2))


def _pick_nk_tiles(S: int, T: int, in_bytes: int, tn=None, tk=None):
    """N/K tiles chosen once at init (weight padding depends on them)."""
    tn = 512 if tn is None else tn
    tk = 1024 if tk is None else tk
    tn = max(128, min(_round_up(tn, 128), _round_up(T, 128)))
    tk = max(128, min(_round_up(tk, 128), _round_up(S, 128)))

    budget = _vmem_budget_bytes()
    tm_assume = 256  # worst-case M tile used for the footprint check

    def footprint(tn_, tk_):
        # double-buffered x/w tiles + double-buffered out tile + f32 acc + bias
        return (2 * (tm_assume * tk_ + tk_ * tn_) * in_bytes
                + 3 * tm_assume * tn_ * 4 + 2 * tn_ * 4)

    while footprint(tn, tk) > budget and (tk > 128 or tn > 128):
        if tk >= tn and tk > 128:
            tk = _half_128(tk)
        else:
            tn = _half_128(tn)

    # Megacore (v7x has 2 TCs): prefer >=2 N tiles when T allows it so the
    # weight stream (the dominant HBM traffic) is split across both cores.
    if _round_up(T, tn) // tn < 2:
        tn_half = _half_128(tn)
        if tn_half < tn and _round_up(T, tn_half) // tn_half >= 2:
            tn = tn_half
    return tn, tk


def _pick_m_tile(B: int, tn: int, tk: int, in_bytes: int, use_bf16: bool, tm=None):
    # bf16 packs two rows per sublane -> keep tm a multiple of 16 on that path.
    m_align = 16 if use_bf16 else 8
    tm = 256 if tm is None else tm
    tm = max(m_align, min(_round_up(tm, m_align), _round_up(B, m_align)))

    budget = _vmem_budget_bytes()

    def footprint(tm_):
        return (2 * (tm_ * tk + tk * tn) * in_bytes
                + 3 * tm_ * tn * 4 + 2 * tn * 4)

    while footprint(tm) > budget and tm > m_align:
        tm = max(m_align, m_align * ((tm // m_align) // 2))
    return tm


# ---------------------------------------------------------------------------
# Kernels
# ---------------------------------------------------------------------------

def _linear_kernel_f32out(x_ref, w_ref, b_ref, o_ref):
    """f32 output: accumulate directly into o_ref (no scratch)."""
    k = pl.program_id(2)
    p = jnp.dot(x_ref[...], w_ref[...], preferred_element_type=jnp.float32)

    @pl.when(k == 0)
    def _():
        o_ref[...] = p          # direct write: no zero-init store + add

    @pl.when(k > 0)
    def _():
        o_ref[...] += p

    @pl.when(k == pl.num_programs(2) - 1)
    def _():
        o_ref[...] += b_ref[...]   # bias fused into the finalize, lane-dense tn


def _linear_kernel_accout(x_ref, w_ref, b_ref, o_ref, acc_ref):
    """Non-f32 output: f32 VMEM accumulator, cast on the last K step."""
    k = pl.program_id(2)
    p = jnp.dot(x_ref[...], w_ref[...], preferred_element_type=jnp.float32)

    @pl.when(k == 0)
    def _():
        acc_ref[...] = p

    @pl.when(k > 0)
    def _():
        acc_ref[...] += p

    @pl.when(k == pl.num_programs(2) - 1)
    def _():
        o_ref[...] = (acc_ref[...] + b_ref[...]).astype(o_ref.dtype)


@functools.partial(jax.jit, static_argnames=("tm", "tn", "tk", "out_dtype"))
def _linear_pallas(x_p, w_p, b_p, *, tm, tn, tk, out_dtype):
    m_pad, k_pad = x_p.shape
    k_pad2, n_pad = w_p.shape
    assert k_pad == k_pad2, (k_pad, k_pad2)
    grid = (m_pad // tm, n_pad // tn, k_pad // tk)

    out_dtype = jnp.dtype(out_dtype)
    cost = pl.CostEstimate(
        flops=2 * m_pad * k_pad * n_pad,
        bytes_accessed=(m_pad * k_pad * x_p.dtype.itemsize
                        + k_pad * n_pad * w_p.dtype.itemsize
                        + m_pad * n_pad * out_dtype.itemsize),
        transcendentals=0,
    )

    f32_out = out_dtype == jnp.dtype(jnp.float32)
    kernel = _linear_kernel_f32out if f32_out else _linear_kernel_accout
    scratch = [] if f32_out else [pltpu.VMEM((tm, tn), jnp.float32)]

    return pl.pallas_call(
        kernel,
        out_shape=jax.ShapeDtypeStruct((m_pad, n_pad), out_dtype),
        grid_spec=pltpu.PrefetchScalarGridSpec(
            num_scalar_prefetch=0,
            grid=grid,
            in_specs=[
                pl.BlockSpec((tm, tk), lambda i, j, k: (i, k)),  # x tile
                pl.BlockSpec((tk, tn), lambda i, j, k: (k, j)),  # w tile
                pl.BlockSpec((1, tn), lambda i, j, k: (0, j)),   # bias row
            ],
            out_specs=pl.BlockSpec((tm, tn), lambda i, j, k: (i, j)),
            scratch_shapes=scratch,
        ),
        compiler_params=pltpu.CompilerParams(
            dimension_semantics=("parallel", "parallel", "arbitrary"),
            vmem_limit_bytes=_vmem_budget_bytes(),
        ),
        cost_estimate=cost,
    )(x_p, w_p, b_p)


# ---------------------------------------------------------------------------
# Module-level API (mirrors VectorTransformer)
# ---------------------------------------------------------------------------

def init_vector_transformer(weight, bias, *, use_bf16=False, tn=None, tk=None):
    """One-time prep of the nn.Linear parameters (transpose, pad, optional cast).

    weight: (target_dim, source_dim)  -- PyTorch nn.Linear layout
    bias:   (target_dim,)
    Returns a params dict reused across forward calls.
    """
    T, S = weight.shape
    w_t = jnp.asarray(weight).T                      # (S, T)
    b = jnp.asarray(bias, jnp.float32)
    if use_bf16:
        # NOTE: the bf16 path also casts activations in forward(); both input
        # and weight precision are reduced (f32 accumulation on the MXU).
        w_t = w_t.astype(jnp.bfloat16)

    in_bytes = jnp.dtype(w_t.dtype).itemsize
    tn, tk = _pick_nk_tiles(S, T, in_bytes, tn, tk)
    n_pad = _round_up(T, tn)
    k_pad = _round_up(S, tk)

    # Pad only when actually required (padding re-writes the array in HBM).
    if (k_pad, n_pad) == (S, T):
        w_p = w_t
    else:
        w_p = jnp.zeros((k_pad, n_pad), w_t.dtype).at[:S, :T].set(w_t)
    if n_pad == T:
        b_p = b.reshape(1, T)
    else:
        b_p = jnp.zeros((1, n_pad), jnp.float32).at[0, :T].set(b)

    return {
        "w_p": w_p, "b_p": b_p,        # padded params (kernel path)
        "w_t": w_t, "b": b,            # unpadded params (XLA fast path)
        "S": S, "T": T, "tn": tn, "tk": tk,
        "use_bf16": use_bf16,
    }


# Below ~1 MFLOP a standalone pallas_call is pure launch latency; let XLA fuse.
_TINY_FLOPS = 1 << 20


def vector_transformer(x, params, *, tm=None, force_pallas=False):
    """Forward of VectorTransformer: x @ weight.T + bias, output in x.dtype."""
    B, S = x.shape
    assert S == params["S"], (S, params["S"])
    T = params["T"]
    out_dtype = x.dtype

    if params["use_bf16"]:
        x = x.astype(jnp.bfloat16)

    # Small-problem fast path (launch-latency bound otherwise).
    if not force_pallas and 2 * B * S * T < _TINY_FLOPS:
        y = jnp.dot(x, params["w_t"], preferred_element_type=jnp.float32)
        return (y + params["b"]).astype(out_dtype)

    tn, tk = params["tn"], params["tk"]
    in_bytes = jnp.dtype(x.dtype).itemsize
    tm = _pick_m_tile(B, tn, tk, in_bytes, params["use_bf16"], tm)

    k_pad = params["w_p"].shape[0]
    m_pad = _round_up(B, tm)
    if (m_pad, k_pad) != (B, S):           # pad x only when needed
        x = jnp.zeros((m_pad, k_pad), x.dtype).at[:B, :S].set(x)

    out = _linear_pallas(x, params["w_p"], params["b_p"],
                         tm=tm, tn=tn, tk=tk, out_dtype=jnp.dtype(out_dtype))
    if out.shape != (B, T):
        out = out[:B, :T]
    return out


if __name__ == "__main__":
    # Shapes consistent with the module: batch=8, source_dim=32, target_dim=16.
    B, SOURCE_DIM, TARGET_DIM = 8, 32, 16

    key = jax.random.PRNGKey(0)
    kx, kw, kb = jax.random.split(key, 3)

    # nn.Linear(source_dim, target_dim): weight (T, S), bias (T,)
    bound = 1.0 / (SOURCE_DIM ** 0.5)
    weight = jax.random.uniform(
        kw, (TARGET_DIM, SOURCE_DIM), jnp.float32, minval=-bound, maxval=bound)
    bias = jax.random.uniform(
        kb, (TARGET_DIM,), jnp.float32, minval=-bound, maxval=bound)
    x = jax.random.normal(kx, (B, SOURCE_DIM), jnp.float32)

    ref = x @ weight.T + bias

    # f32 Pallas path (forced: the auto path routes this tiny GEMM to fused XLA).
    params = init_vector_transformer(weight, bias)
    out = jax.block_until_ready(vector_transformer(x, params, force_pallas=True))
    assert out.shape == (B, TARGET_DIM)
    assert jnp.allclose(out, ref, atol=1e-5, rtol=1e-5)

    # Auto path (XLA fast path at this tiny shape) must match too.
    out_fast = jax.block_until_ready(vector_transformer(x, params))
    assert jnp.allclose(out_fast, ref, atol=1e-5, rtol=1e-5)

    # bf16-operand / f32-accumulate path (weights cast once at init).
    params_bf16 = init_vector_transformer(weight, bias, use_bf16=True)
    out_bf16 = jax.block_until_ready(
        vector_transformer(x, params_bf16, force_pallas=True))
    assert out_bf16.shape == (B, TARGET_DIM)
    assert jnp.allclose(out_bf16, ref, atol=5e-2, rtol=5e-2)

    # Larger shape: exercises the multi-tile N and K-reduction path with no
    # padding at all (skip-pad optimization) and the auto Pallas routing.
    B2, S2, T2 = 256, 2048, 1024
    kw2, kb2, kx2 = jax.random.split(jax.random.PRNGKey(1), 3)
    w2 = jax.random.normal(kw2, (T2, S2), jnp.float32) * (1.0 / S2 ** 0.5)
    b2 = jax.random.normal(kb2, (T2,), jnp.float32)
    x2 = jax.random.normal(kx2, (B2, S2), jnp.float32)
    params2 = init_vector_transformer(w2, b2)
    out2 = jax.block_until_ready(vector_transformer(x2, params2))
    ref2 = x2 @ w2.T + b2
    assert out2.shape == (B2, T2)
    assert jnp.allclose(out2, ref2, atol=2e-2, rtol=2e-2)

    print("KERNEL_OK")
</pallas_src>

<mosaic_0001>
module attributes {stable_mosaic.version = 11 : i64} {
  func.func @_linear_kernel_f32out(%arg0: i32, %arg1: i32, %arg2: i32, %arg3: memref<8x128xf32, #tpu.memory_space<vmem>>, %arg4: memref<128x128xf32, #tpu.memory_space<vmem>>, %arg5: memref<1x128xf32, #tpu.memory_space<vmem>>, %arg6: memref<8x128xf32, #tpu.memory_space<vmem>>) attributes {dimension_semantics = [#tpu.dimension_semantics<parallel>, #tpu.dimension_semantics<parallel>, #tpu.dimension_semantics<arbitrary>], iteration_bounds = array<i64: 1, 1, 1>, scalar_prefetch = 0 : i64, scratch_operands = 0 : i64, tpu.core_type = #tpu.core_type<tc>, window_params = [{transform_indices = @transform_0, window_bounds = array<i64: 8, 128>}, {transform_indices = @transform_1, window_bounds = array<i64: 128, 128>}, {transform_indices = @transform_2, window_bounds = array<i64: 1, 128>}, {transform_indices = @transform_3, window_bounds = array<i64: 8, 128>}]} {
    %c0 = arith.constant 0 : index
    %c0_0 = arith.constant 0 : index
    %0 = vector.load %arg3[%c0, %c0_0] : memref<8x128xf32, #tpu.memory_space<vmem>>, vector<8x128xf32>
    %c0_1 = arith.constant 0 : index
    %c0_2 = arith.constant 0 : index
    %1 = vector.load %arg4[%c0_1, %c0_2] : memref<128x128xf32, #tpu.memory_space<vmem>>, vector<128x128xf32>
    %cst = arith.constant dense<0.000000e+00> : vector<8x128xf32>
    %2 = tpu.matmul %0, %1, %cst {dimension_numbers = #tpu.dot_dimension_numbers<[1], [0], [0], [1], [0, 0, 1, 1], [], []>} : vector<8x128xf32>, vector<128x128xf32>, vector<8x128xf32> -> vector<8x128xf32>
    %c0_i32 = arith.constant 0 : i32
    %3 = arith.cmpi eq, %arg2, %c0_i32 : i32
    %4 = arith.extui %3 : i1 to i32
    %c0_i32_3 = arith.constant 0 : i32
    %5 = arith.cmpi ne, %4, %c0_i32_3 : i32
    scf.if %5 {
      %c0_8 = arith.constant 0 : index
      %c0_9 = arith.constant 0 : index
      %12 = vector.load %arg6[%c0_8, %c0_9] : memref<8x128xf32, #tpu.memory_space<vmem>>, vector<8x128xf32>
      tpu.vector_store %arg6[%c0_8, %c0_9], %2 {strides = array<i32>} : memref<8x128xf32, #tpu.memory_space<vmem>>, vector<8x128xf32>,
    } else {
    }
    %c0_i32_4 = arith.constant 0 : i32
    %6 = arith.cmpi sgt, %arg2, %c0_i32_4 : i32
    %7 = arith.extui %6 : i1 to i32
    %c0_i32_5 = arith.constant 0 : i32
    %8 = arith.cmpi ne, %7, %c0_i32_5 : i32
    scf.if %8 {
      %c0_8 = arith.constant 0 : index
      %c0_9 = arith.constant 0 : index
      %12 = vector.load %arg6[%c0_8, %c0_9] : memref<8x128xf32, #tpu.memory_space<vmem>>, vector<8x128xf32>
      %13 = arith.addf %12, %2 : vector<8x128xf32>
      %c0_10 = arith.constant 0 : index
      %c0_11 = arith.constant 0 : index
      %14 = vector.load %arg6[%c0_10, %c0_11] : memref<8x128xf32, #tpu.memory_space<vmem>>, vector<8x128xf32>
      tpu.vector_store %arg6[%c0_10, %c0_11], %13 {strides = array<i32>} : memref<8x128xf32, #tpu.memory_space<vmem>>, vector<8x128xf32>,
    } else {
    }
    %c0_i32_6 = arith.constant 0 : i32
    %9 = arith.cmpi eq, %arg2, %c0_i32_6 : i32
    %10 = arith.extui %9 : i1 to i32
    %c0_i32_7 = arith.constant 0 : i32
    %11 = arith.cmpi ne, %10, %c0_i32_7 : i32
    scf.if %11 {
      %c0_8 = arith.constant 0 : index
      %c0_9 = arith.constant 0 : index
      %12 = vector.load %arg6[%c0_8, %c0_9] : memref<8x128xf32, #tpu.memory_space<vmem>>, vector<8x128xf32>
      %c0_10 = arith.constant 0 : index
      %c0_11 = arith.constant 0 : index
      %13 = vector.load %arg5[%c0_10, %c0_11] : memref<1x128xf32, #tpu.memory_space<vmem>>, vector<1x128xf32>
      %14 = vector.broadcast %13 : vector<1x128xf32> to vector<8x128xf32>
      %15 = arith.addf %12, %14 : vector<8x128xf32>
      %c0_12 = arith.constant 0 : index
      %c0_13 = arith.constant 0 : index
      %16 = vector.load %arg6[%c0_12, %c0_13] : memref<8x128xf32, #tpu.memory_space<vmem>>, vector<8x128xf32>
      tpu.vector_store %arg6[%c0_12, %c0_13], %15 {strides = array<i32>} : memref<8x128xf32, #tpu.memory_space<vmem>>, vector<8x128xf32>,
    } else {
    }
    return
  }
  func.func @transform_0(%arg0: i32, %arg1: i32, %arg2: i32) -> (i32, i32) {
    %c0_i32 = arith.constant 0 : i32
    return %arg0, %arg2 : i32, i32
  }
  func.func @transform_1(%arg0: i32, %arg1: i32, %arg2: i32) -> (i32, i32) {
    %c0_i32 = arith.constant 0 : i32
    return %arg2, %arg1 : i32, i32
  }
  func.func @transform_2(%arg0: i32, %arg1: i32, %arg2: i32) -> (i32, i32) {
    %c0_i32 = arith.constant 0 : i32
    %c0_i32_0 = arith.constant 0 : i32
    return %c0_i32, %arg1 : i32, i32
  }
  func.func @transform_3(%arg0: i32, %arg1: i32, %arg2: i32) -> (i32, i32) {
    %c0_i32 = arith.constant 0 : i32
    return %arg0, %arg1 : i32, i32
  }
}

</mosaic_0001>

<llo_original>
// kernel: _linear_pallas.1
$region0: #{_linear_pallas.1}
  #allocation0 [shape = 'u32[]', space=smem, size = 0x4, offset = 0x4, fixed_abs, tag = 'smem constant byte address 0x4 - core index']
  #allocation1 [shape = 'u32[72,128]{1,0:T(1,128)}', space=vmem, size = 0x9000, scoped, tag = 'internal scratch']
  %s0 = inlined_call_operand.hbm [shape: f32[8,128], index: 0, kind: input, shape index: {}]
  %s1 = inlined_call_operand.hbm [shape: f32[128,128], index: 1, kind: input, shape index: {}]
  %s2 = inlined_call_operand.vmem [shape: f32[1,128], index: 2, kind: input, shape index: {}]
  %s3 = inlined_call_operand.hbm [shape: f32[8,128], index: 3, kind: output, shape index: {}]
  %s4 = sld [smem:[#allocation0]]
  $region42: #{_linear_pallas.1} parent=0
    _
  %s6 = ssub.s32 1, %s4
  %s7 = scalar_select 0, %s6, %s4
  $region1: #{_linear_pallas.1} parent=0
    #allocation2 [shape = 'u8[4096]{0}', space=vmem, size = 0x1000, scoped, tag = 'input window, operand 0, single buffered']
    #allocation3 [shape = 's32[1]{0}', space=sflag, size = 0x4, scoped, tag = 'scoped memory for _linear_pallas.1']
    #allocation4 [shape = 's32[1]{0}', space=sflag, size = 0x4, scoped, tag = 'scoped memory for _linear_pallas.1']
    #allocation5 [shape = 'u8[65536]{0}', space=vmem, size = 0x10000, scoped, tag = 'input window, operand 1, single buffered']
    #allocation6 [shape = 's32[1]{0}', space=sflag, size = 0x4, scoped, tag = 'scoped memory for _linear_pallas.1']
    #allocation7 [shape = 'u8[4096]{0}', space=vmem, size = 0x1000, scoped, tag = 'output window, operand 0, single buffered']
    %8 = vsyncpa [#allocation3], 0
    %9 = vsyncpa [#allocation6], 0
    %10 = vsyncpa [#allocation4], 0
    // Predicated region
    $region2: #{_linear_pallas.1} parent=1 // pred_check
      _
    $region3: #{_linear_pallas.1} parent=1 // pred_check_branch
      %12 = sbr.rel (0) target = $region5
    $region4: #{_linear_pallas.1} parent=1 // pred_region
      %14 = vsyncadd [#allocation3], 0
      %s16 = sshll.u32 %s0, 4
      %s17 = int_to_ptr.hbm [resolvable:$true] %s16
      %s18 = sshll.u32 [#allocation2], 4
      %s19 = int_to_ptr.vmem [resolvable:$true] %s18
      %21 = dma.hbm_to_vmem [thread:$0]  %s17, 128, %s19, [#allocation3]
    $region5: #{_linear_pallas.1} parent=1 // pred_fallthru
      _
    // Predicated region
    $region6: #{_linear_pallas.1} parent=1 // pred_check
      _
    $region7: #{_linear_pallas.1} parent=1 // pred_check_branch
      %23 = sbr.rel (0) target = $region9
    $region8: #{_linear_pallas.1} parent=1 // pred_region
      %25 = vsyncadd [#allocation6], 0
      %s26 = sshll.u32 %s1, 4
      %s27 = int_to_ptr.hbm [resolvable:$true] %s26
      %s28 = sshll.u32 [#allocation5], 4
      %s29 = int_to_ptr.vmem [resolvable:$true] %s28
      %34 = dma.hbm_to_vmem [thread:$0]  %s27, 2048, %s29, [#allocation6], 128, 128, 8
    $region9: #{_linear_pallas.1} parent=1 // pred_fallthru
      _
    // Predicated region
    $region10: #{_linear_pallas.1} parent=1 // pred_check
      _
    $region11: #{_linear_pallas.1} parent=1 // pred_check_branch
      %36 = sbr.rel (0) target = $region13
    $region12: #{_linear_pallas.1} parent=1 // pred_region
      _
    $region13: #{_linear_pallas.1} parent=1 // pred_fallthru
      _
    // Predicated region
    $region14: #{_linear_pallas.1} parent=1 // pred_check
      _
    $region15: #{_linear_pallas.1} parent=1 // pred_check_branch
      %38 = sbr.rel (0) target = $region17
    $region16: #{_linear_pallas.1} parent=1 // pred_region
      %40 = dma.done [#allocation3], 128
    $region17: #{_linear_pallas.1} parent=1 // pred_fallthru
      _
    // Predicated region
    $region18: #{_linear_pallas.1} parent=1 // pred_check
      _
    $region19: #{_linear_pallas.1} parent=1 // pred_check_branch
      %42 = sbr.rel (0) target = $region21
    $region20: #{_linear_pallas.1} parent=1 // pred_region
      %44 = dma.done [#allocation6], 2048
    $region21: #{_linear_pallas.1} parent=1 // pred_fallthru
      _
    %v45 = vld [vmem:[#allocation2] sm:$0xff]
    %v46 = vld [vmem:[#allocation5] sm:$0xff]
    %v47 = vld [vmem:[#allocation5 + $0x8] sm:$0xff]
    %v48 = vld [vmem:[#allocation5 + $0x10] sm:$0xff]
    %v49 = vld [vmem:[#allocation5 + $0x18] sm:$0xff]
    %v50 = vld [vmem:[#allocation5 + $0x20] sm:$0xff]
    %v51 = vld [vmem:[#allocation5 + $0x28] sm:$0xff]
    %v52 = vld [vmem:[#allocation5 + $0x30] sm:$0xff]
    %v53 = vld [vmem:[#allocation5 + $0x38] sm:$0xff]
    %v54 = vld [vmem:[#allocation5 + $0x40] sm:$0xff]
    %v55 = vld [vmem:[#allocation5 + $0x48] sm:$0xff]
    %v56 = vld [vmem:[#allocation5 + $0x50] sm:$0xff]
    %v57 = vld [vmem:[#allocation5 + $0x58] sm:$0xff]
    %v58 = vld [vmem:[#allocation5 + $0x60] sm:$0xff]
    %v59 = vld [vmem:[#allocation5 + $0x68] sm:$0xff]
    %v60 = vld [vmem:[#allocation5 + $0x70] sm:$0xff]
    %v61 = vld [vmem:[#allocation5 + $0x78] sm:$0xff]
    %62 = vmatpush.msra.mxu0 %v61
    %63 = vmatpush.msra.mxu0 %v60
    %64 = vmatpush.msra.mxu0 %v59
    %65 = vmatpush.msra.mxu0 %v58
    %66 = vmatpush.msra.mxu0 %v57
    %67 = vmatpush.msra.mxu0 %v56
    %68 = vmatpush.msra.mxu0 %v55
    %69 = vmatpush.msra.mxu0 %v54
    %70 = vmatpush.msra.mxu0 %v53
    %71 = vmatpush.msra.mxu0 %v52
    %72 = vmatpush.msra.mxu0 %v51
    %73 = vmatpush.msra.mxu0 %v50
    %74 = vmatpush.msra.mxu0 %v49
    %75 = vmatpush.msra.mxu0 %v48
    %76 = vmatpush.msra.mxu0 %v47
    %77 = vmatpush.msra.mxu0 %v46
    %78 = vmatmul.f32.gmra.mxu0 %v45
    %v79 = vpop.f32.mrf.mxu0
    %v80 = vadd.f32 0.0, %v79
    %81 = vdwg.mxu0
    %p82 = scmp.eq.s32.totalorder 0, 0
    // Predicated region
    $region22: #{_linear_pallas.1} parent=1 // pred_check
      %p83 = pneg %p82
    $region23: #{_linear_pallas.1} parent=1 // pred_check_branch
      %85 = sbr.rel (%p83) target = $region25
    $region24: #{_linear_pallas.1} parent=1 // pred_region
      %86 = vst [vmem:[#allocation7] sm:$0xff] %v80
    $region25: #{_linear_pallas.1} parent=1 // pred_fallthru
      _
    %p87 = scmp.gt.s32.totalorder 0, 0
    // Predicated region
    $region26: #{_linear_pallas.1} parent=1 // pred_check
      %p88 = pneg %p87
    $region27: #{_linear_pallas.1} parent=1 // pred_check_branch
      %90 = sbr.rel (%p88) target = $region29
    $region28: #{_linear_pallas.1} parent=1 // pred_region
      %v91 = vld [vmem:[#allocation7] sm:$0xff]
      %v92 = vadd.f32 %v91, %v80
      %93 = vst [vmem:[#allocation7] sm:$0xff] %v92
    $region29: #{_linear_pallas.1} parent=1 // pred_fallthru
      _
    // Predicated region
    $region30: #{_linear_pallas.1} parent=1 // pred_check
      %p94 = pneg %p82
    $region31: #{_linear_pallas.1} parent=1 // pred_check_branch
      %96 = sbr.rel (%p94) target = $region33
    $region32: #{_linear_pallas.1} parent=1 // pred_region
      %v97 = vld [vmem:[#allocation7] sm:$0xff]
      %v98 = vld [vmem:[%s2] sm:$0x1]
      %v100 = vperm.slane %v98, 0
      %v102 = vadd.f32 %v97, %v100
      %103 = vst [vmem:[#allocation7] sm:$0xff] %v102
    $region33: #{_linear_pallas.1} parent=1 // pred_fallthru
      _
    // Predicated region
    $region34: #{_linear_pallas.1} parent=1 // pred_check
      _
    $region35: #{_linear_pallas.1} parent=1 // pred_check_branch
      %105 = sbr.rel (0) target = $region37
    $region36: #{_linear_pallas.1} parent=1 // pred_region
      %107 = vsyncadd [#allocation4], 0
      %s109 = sshll.u32 [#allocation7], 4
      %s110 = int_to_ptr.vmem [resolvable:$true] %s109
      %s111 = sshll.u32 %s3, 4
      %s112 = int_to_ptr.hbm [resolvable:$true] %s111
      %114 = dma.vmem_to_hbm [thread:$0]  %s110, 128, %s112, [#allocation4]
    $region37: #{_linear_pallas.1} parent=1 // pred_fallthru
      _
    // Predicated region
    $region38: #{_linear_pallas.1} parent=1 // pred_check
      _
    $region39: #{_linear_pallas.1} parent=1 // pred_check_branch
      %116 = sbr.rel (0) target = $region41
    $region40: #{_linear_pallas.1} parent=1 // pred_region
      %118 = dma.done [#allocation4], 128
    $region41: #{_linear_pallas.1} parent=1 // pred_fallthru
      _
    %119 = vsyncpa [#allocation3], 1
    %120 = vsyncpa [#allocation6], 1
    %121 = vsyncpa [#allocation4], 1

</llo_original>
